<compile_context>
chip_gen: v7x
topology: tpu7x:2x2x1
jax: 0.10.0
libtpu: 0.0.40
codegen_flags: <defaults>
</compile_context>

<pallas_src>
import functools

import jax
import jax.numpy as jnp
from jax.experimental import pallas as pl
from jax.experimental.pallas import tpu as pltpu


def _round_up(x, m):
    return (x + m - 1) // m * m


def _vmem_capacity_bytes():
    """Generation-aware physical VMEM (v7x: 64 MiB/TC, v5e/v6e: 128 MiB)."""
    try:
        return int(pltpu.get_tpu_info().vmem_capacity_bytes)
    except Exception:
        return 64 * 1024 * 1024  # conservative fallback, safe on every gen


def additive_kernel(x_ref, w_ref, b_ref, o_ref):
    # x_ref: (tb, D) VMEM, streamed per grid step
    # w_ref: (D, 1)  VMEM, resident across all steps
    # b_ref: (1,)    SMEM scalar
    # o_ref: (tb, 1) VMEM
    acc = jnp.dot(x_ref[...], w_ref[...], preferred_element_type=jnp.float32)
    o_ref[...] = acc + b_ref[0]


@functools.partial(jax.jit, static_argnames=("tile_b",))
def additive_forward(x, w_stacked, bias, *, tile_b=None):
    """x: (B, D) f32/bf16, w_stacked: (D, 1), bias: (1,) -> (B, 1) f32."""
    B, D = x.shape
    assert w_stacked.shape == (D, 1)

    # VMEM footprint per streamed row (lane dim pads to 128 inside VMEM).
    dl = _round_up(D, 128)
    x_row_bytes = dl * x.dtype.itemsize
    out_row_bytes = 512  # (tb, 1) f32 block: one (8,128) vreg tile per 8 rows

    vmem_cap = _vmem_capacity_bytes()
    if tile_b is None:
        # Size double-buffered X + output tiles to ~40% of physical VMEM,
        # leaving headroom for the resident weight and compiler scratch.
        budget = int(vmem_cap * 0.40)
        tile_b = max(1024,
                     (budget // (2 * (x_row_bytes + out_row_bytes))) // 1024 * 1024)

    # Small batches: one tight tile (rounded to the sublane multiple of 8).
    tb = min(tile_b, _round_up(B, 8))
    # Megacore (v7x: 2 TCs/chip): keep >=2 parallel grid steps when the batch
    # is big enough that splitting still amortizes the per-step overhead.
    if pl.cdiv(B, tb) < 2 and B >= 4096:
        tb = _round_up(pl.cdiv(B, 2), 8)

    grid = (pl.cdiv(B, tb),)  # ragged last block: no batch padding; Pallas
                              # drops writes to out-of-range output rows.

    vmem_need = 2 * tb * (x_row_bytes + out_row_bytes) + 2 * 128 * 128 * 4 + (2 << 20)
    vmem_limit = int(min(max(vmem_need, 32 << 20), int(vmem_cap * 0.9)))

    cost = pl.CostEstimate(
        flops=2 * B * D,
        transcendentals=0,
        bytes_accessed=B * D * x.dtype.itemsize
        + D * w_stacked.dtype.itemsize
        + B * 4,
    )

    return pl.pallas_call(
        additive_kernel,
        out_shape=jax.ShapeDtypeStruct((B, 1), jnp.float32),
        grid=grid,
        in_specs=[
            # X streamed straight from HBM: last block dim == full array dim
            # (legal), so no jnp.pad copy of X is ever materialized.
            pl.BlockSpec((tb, D), lambda i: (i, 0)),
            # Stacked weight: same tiny block every step -> VMEM resident.
            pl.BlockSpec((D, 1), lambda i: (0, 0)),
            # Bias on the scalar path.
            pl.BlockSpec(memory_space=pltpu.MemorySpace.SMEM),
        ],
        out_specs=pl.BlockSpec((tb, 1), lambda i: (i, 0)),
        compiler_params=pltpu.CompilerParams(
            dimension_semantics=("parallel",),  # megacore sharding on v7x
            vmem_limit_bytes=vmem_limit,        # generation-aware budget
        ),
        cost_estimate=cost,
    )(x, w_stacked, bias.reshape((1,)).astype(jnp.float32))


class AdditiveModelPallas:
    def __init__(self, n_features, n_basis, key):
        self.n_features = n_features
        self.n_basis = n_basis
        # One (n_basis, 1) weight per feature, init ~ N(0,1) * 0.01 (torch.randn * 0.01).
        keys = jax.random.split(key, n_features)
        ws = [jax.random.normal(k, (n_basis, 1), dtype=jnp.float32) * 0.01 for k in keys]
        # The per-feature slice-matmul-sum of the PyTorch loop is exactly this
        # single stacked matmul.
        self.w_stacked = jnp.concatenate(ws, axis=0)  # (n_features * n_basis, 1)
        self.bias = jnp.zeros((1,), dtype=jnp.float32)

    def __call__(self, X):
        return additive_forward(X, self.w_stacked, self.bias)


if __name__ == "__main__":
    n_features = 30
    n_basis = 4
    batch = 8

    key = jax.random.PRNGKey(0)
    k_param, k_x = jax.random.split(key)

    model = AdditiveModelPallas(n_features, n_basis, k_param)

    X = jax.random.normal(k_x, (batch, n_features * n_basis), dtype=jnp.float32)

    y = jax.block_until_ready(model(X))

    # Pure-JAX reference (same semantics as the PyTorch loop).
    y_ref = X @ model.w_stacked + model.bias[0]
    assert y.shape == (batch, 1)
    assert jnp.allclose(y, y_ref, atol=1e-5, rtol=1e-5)

    print("KERNEL_OK")
</pallas_src>

<mosaic_0001>
module attributes {stable_mosaic.version = 11 : i64} {
  func.func @additive_kernel(%arg0: i32, %arg1: memref<8x120xf32, #tpu.memory_space<vmem>>, %arg2: memref<120x1xf32, #tpu.memory_space<vmem>>, %arg3: memref<1xf32, #tpu.memory_space<smem>>, %arg4: memref<8x1xf32, #tpu.memory_space<vmem>>) attributes {dimension_semantics = [#tpu.dimension_semantics<parallel>], iteration_bounds = array<i64: 1>, scalar_prefetch = 0 : i64, scratch_operands = 0 : i64, tpu.core_type = #tpu.core_type<tc>, window_params = [{transform_indices = @transform_0, window_bounds = array<i64: 8, 120>}, {pipeline_mode = #tpu.pipeline_mode<synchronous>, transform_indices = @transform_1, window_bounds = array<i64: 120, 1>}, {transform_indices = @transform_2, window_bounds = array<i64: 1>}, {transform_indices = @transform_3, window_bounds = array<i64: 8, 1>}]} {
    %c0 = arith.constant 0 : index
    %c0_0 = arith.constant 0 : index
    %0 = vector.load %arg1[%c0, %c0_0] : memref<8x120xf32, #tpu.memory_space<vmem>>, vector<8x120xf32>
    %c0_1 = arith.constant 0 : index
    %c0_2 = arith.constant 0 : index
    %1 = vector.load %arg2[%c0_1, %c0_2] : memref<120x1xf32, #tpu.memory_space<vmem>>, vector<120x1xf32>
    %cst = arith.constant dense<0.000000e+00> : vector<8x1xf32>
    %2 = tpu.matmul %0, %1, %cst {dimension_numbers = #tpu.dot_dimension_numbers<[1], [0], [0], [1], [0, 0, 1, 1], [], []>} : vector<8x120xf32>, vector<120x1xf32>, vector<8x1xf32> -> vector<8x1xf32>
    %c0_3 = arith.constant 0 : index
    %3 = memref.load %arg3[%c0_3] : memref<1xf32, #tpu.memory_space<smem>>
    %4 = vector.broadcast %3 : f32 to vector<8x1xf32>
    %5 = arith.addf %2, %4 : vector<8x1xf32>
    %c0_4 = arith.constant 0 : index
    %c0_5 = arith.constant 0 : index
    %6 = vector.load %arg4[%c0_4, %c0_5] : memref<8x1xf32, #tpu.memory_space<vmem>>, vector<8x1xf32>
    tpu.vector_store %arg4[%c0_4, %c0_5], %5 {strides = array<i32>} : memref<8x1xf32, #tpu.memory_space<vmem>>, vector<8x1xf32>,
    return
  }
  func.func @transform_0(%arg0: i32) -> (i32, i32) {
    %c0_i32 = arith.constant 0 : i32
    %c0_i32_0 = arith.constant 0 : i32
    return %arg0, %c0_i32 : i32, i32
  }
  func.func @transform_1(%arg0: i32) -> (i32, i32) {
    %c0_i32 = arith.constant 0 : i32
    %c0_i32_0 = arith.constant 0 : i32
    %c0_i32_1 = arith.constant 0 : i32
    return %c0_i32, %c0_i32_0 : i32, i32
  }
  func.func @transform_2(%arg0: i32) -> i32 {
    %c0_i32 = arith.constant 0 : i32
    %c0_i32_0 = arith.constant 0 : i32
    return %c0_i32 : i32
  }
  func.func @transform_3(%arg0: i32) -> (i32, i32) {
    %c0_i32 = arith.constant 0 : i32
    %c0_i32_0 = arith.constant 0 : i32
    return %arg0, %c0_i32 : i32, i32
  }
}

</mosaic_0001>

<llo_original>
// kernel: additive_forward.1
$region0: #{additive_forward.1}
  #allocation0 [shape = 'u32[]', space=smem, size = 0x4, offset = 0x4, fixed_abs, tag = 'smem constant byte address 0x4 - core index']
  #allocation1 [shape = 'u32[144,128]{1,0:T(1,128)}', space=vmem, size = 0x12000, scoped, tag = 'internal scratch']
  #allocation2 [shape = 'f32[1]{0:T(128)S(6)}', space=smem, size = 0x200, scoped, tag = 'scoped memory for additive_forward.1']
  %s0 = inlined_call_operand.vmem [shape: f32[8,120], index: 0, kind: input, shape index: {}]
  %s1 = inlined_call_operand.vmem [shape: f32[120,1], index: 1, kind: input, shape index: {}]
  %s2 = inlined_call_operand.<no memory space> [shape: f32[1], index: 2, kind: input, shape index: {}]
  %s3 = inlined_call_operand.vmem [shape: f32[8,1], index: 3, kind: output, shape index: {}]
  %s4 = sld [smem:[#allocation0]]
  $region22: #{additive_forward.1} parent=0
    _
  %s6 = ssub.s32 1, %s4
  %s7 = scalar_select 0, %s6, %s4
  %8 = sst [smem:[#allocation2]] %s2
  // Predicated region
  $region2: #{additive_forward.1} parent=0 // pred_check
    _
  $region3: #{additive_forward.1} parent=0 // pred_check_branch
    %10 = sbr.rel (0) target = $region5
  $region4: #{additive_forward.1} parent=0 // pred_region
    _
  $region5: #{additive_forward.1} parent=0 // pred_fallthru
    _
  // Predicated region
  $region6: #{additive_forward.1} parent=0 // pred_check
    _
  $region7: #{additive_forward.1} parent=0 // pred_check_branch
    %12 = sbr.rel (0) target = $region9
  $region8: #{additive_forward.1} parent=0 // pred_region
    _
  $region9: #{additive_forward.1} parent=0 // pred_fallthru
    _
  // Predicated region
  $region10: #{additive_forward.1} parent=0 // pred_check
    _
  $region11: #{additive_forward.1} parent=0 // pred_check_branch
    %14 = sbr.rel (0) target = $region13
  $region12: #{additive_forward.1} parent=0 // pred_region
    _
  $region13: #{additive_forward.1} parent=0 // pred_fallthru
    _
  %v15 = vld [vmem:[%s0] sm:$0xff]
  %v16 = vld [vmem:[%s1] sm:$0xff]
  %v17 = vld [vmem:[%s1 + $0x8] sm:$0xff]
  %v18 = vld [vmem:[%s1 + $0x10] sm:$0xff]
  %v19 = vld [vmem:[%s1 + $0x18] sm:$0xff]
  %v20 = vld [vmem:[%s1 + $0x20] sm:$0xff]
  %v21 = vld [vmem:[%s1 + $0x28] sm:$0xff]
  %v22 = vld [vmem:[%s1 + $0x30] sm:$0xff]
  %v23 = vld [vmem:[%s1 + $0x38] sm:$0xff]
  %v24 = vld [vmem:[%s1 + $0x40] sm:$0xff]
  %v25 = vld [vmem:[%s1 + $0x48] sm:$0xff]
  %v26 = vld [vmem:[%s1 + $0x50] sm:$0xff]
  %v27 = vld [vmem:[%s1 + $0x58] sm:$0xff]
  %v28 = vld [vmem:[%s1 + $0x60] sm:$0xff]
  %v29 = vld [vmem:[%s1 + $0x68] sm:$0xff]
  %v30 = vld [vmem:[%s1 + $0x70] sm:$0xff]
  %s31 = sld [smem:[#allocation2]]
  %v32 = vstv %s31
  %vm33 = vcmask 982016
  %v35 = vsel %vm33, %v15, 0
  %37 = vmatprep.subr.mxu0 0.0
  %38 = vmatpush1.msra.mxu0 %v16
  %39 = vmatprep.subr.mxu0 0.0
  %40 = vmatpush1.msra.mxu0 %v17
  %41 = vmatprep.subr.mxu0 0.0
  %42 = vmatpush1.msra.mxu0 %v18
  %43 = vmatprep.subr.mxu0 0.0
  %44 = vmatpush1.msra.mxu0 %v19
  %45 = vmatprep.subr.mxu0 0.0
  %46 = vmatpush1.msra.mxu0 %v20
  %47 = vmatprep.subr.mxu0 0.0
  %48 = vmatpush1.msra.mxu0 %v21
  %49 = vmatprep.subr.mxu0 0.0
  %50 = vmatpush1.msra.mxu0 %v22
  %51 = vmatprep.subr.mxu0 0.0
  %52 = vmatpush1.msra.mxu0 %v23
  %53 = vmatprep.subr.mxu0 0.0
  %54 = vmatpush1.msra.mxu0 %v24
  %55 = vmatprep.subr.mxu0 0.0
  %56 = vmatpush1.msra.mxu0 %v25
  %57 = vmatprep.subr.mxu0 0.0
  %58 = vmatpush1.msra.mxu0 %v26
  %59 = vmatprep.subr.mxu0 0.0
  %60 = vmatpush1.msra.mxu0 %v27
  %61 = vmatprep.subr.mxu0 0.0
  %62 = vmatpush1.msra.mxu0 %v28
  %63 = vmatprep.subr.mxu0 0.0
  %64 = vmatpush1.msra.mxu0 %v29
  %65 = vmatprep.subr.mxu0 0.0
  %66 = vmatpush1.msra.mxu0 %v30
  %67 = vmatprep.subr.mxu0 0.0
  %68 = vmatpush1.msra.mxu0 0.0
  %69 = vmatprep.subr.mxu0 0.0
  %70 = vmatpush1.msra.mxu0 0.0
  %71 = vmatprep.subr.mxu0 0.0
  %72 = vmatpush1.msra.mxu0 0.0
  %73 = vmatprep.subr.mxu0 0.0
  %74 = vmatpush1.msra.mxu0 0.0
  %75 = vmatprep.subr.mxu0 0.0
  %76 = vmatpush1.msra.mxu0 0.0
  %77 = vmatprep.subr.mxu0 0.0
  %78 = vmatpush1.msra.mxu0 0.0
  %79 = vmatprep.subr.mxu0 0.0
  %80 = vmatpush1.msra.mxu0 0.0
  %81 = vmatprep.subr.mxu0 0.0
  %82 = vmatpush1.msra.mxu0 0.0
  %83 = vmatprep.subr.mxu0 0.0
  %84 = vmatpush1.msra.mxu0 0.0
  %85 = vmatprep.subr.mxu0 0.0
  %86 = vmatpush1.msra.mxu0 0.0
  %87 = vmatprep.subr.mxu0 0.0
  %88 = vmatpush1.msra.mxu0 0.0
  %89 = vmatprep.subr.mxu0 0.0
  %90 = vmatpush1.msra.mxu0 0.0
  %91 = vmatprep.subr.mxu0 0.0
  %92 = vmatpush1.msra.mxu0 0.0
  %93 = vmatprep.subr.mxu0 0.0
  %94 = vmatpush1.msra.mxu0 0.0
  %95 = vmatprep.subr.mxu0 0.0
  %96 = vmatpush1.msra.mxu0 0.0
  %97 = vmatprep.subr.mxu0 0.0
  %98 = vmatpush1.msra.mxu0 0.0
  %99 = vmatprep.subr.mxu0 0.0
  %100 = vmatpush1.msra.mxu0 0.0
  %101 = vmatprep.mubr.f32.mxu0 0.0
  %102 = vmatmul.mubr.f32.gmra.mrb[0].mxu0 %v35
  %v103 = vpop.f32.mrb[0].mxu0
  %v104 = vadd.f32 %v32, %v103
  %v105 = vpop.f32.mrb[0].mxu0
  %106 = vdwg.mxu0
  %vm107 = vcmask 7168
  %108 = vst.msk [vmem:[%s3] sm:$0xff] %vm107, %v104
  // Predicated region
  $region14: #{additive_forward.1} parent=0 // pred_check
    _
  $region15: #{additive_forward.1} parent=0 // pred_check_branch
    %110 = sbr.rel (0) target = $region17
  $region16: #{additive_forward.1} parent=0 // pred_region
    _
  $region17: #{additive_forward.1} parent=0 // pred_fallthru
    _
  // Predicated region
  $region18: #{additive_forward.1} parent=0 // pred_check
    _
  $region19: #{additive_forward.1} parent=0 // pred_check_branch
    %112 = sbr.rel (0) target = $region21
  $region20: #{additive_forward.1} parent=0 // pred_region
    _
  $region21: #{additive_forward.1} parent=0 // pred_fallthru
    _

</llo_original>
